<compile_context>
chip_gen: v7x
topology: tpu7x:2x2x1
jax: 0.10.0
libtpu: 0.0.40
codegen_flags: <defaults>
</compile_context>

<pallas_src>
import functools

import jax
import jax.numpy as jnp
import numpy as np
from jax.experimental import pallas as pl
from jax.experimental.pallas import tpu as pltpu

EPS = 1e-5       # nn.BatchNorm1d default eps
LANE = 128
SUBLANE = 8


def _round_up(x, m):
    return ((x + m - 1) // m) * m


# --------------------------------------------------------------------------- #
# Kernel
# --------------------------------------------------------------------------- #
def mlp_kernel(x_ref, *refs):
    """Fused 6-layer MLP forward.

    refs = (W1, b1, W2, b2, ..., W6, b6, out_ref).
    x and the weights are bf16 (BN already folded, feature dims zero-padded to
    128 lanes); biases are f32 [1, out_pad]. Matmuls run bf16 on the MXU with
    f32 accumulation; bias add + ReLU run in f32 (safe on v5e, no bf16 VALU),
    then the activation is carried to the next layer in bf16.
    """
    out_ref = refs[-1]
    p = refs[:-1]
    n_layers = len(p) // 2

    h = x_ref[...]                                   # bf16 [TB, F0_pad]
    for li in range(n_layers):
        w = p[2 * li]                                # bf16 [Fin_pad, Fout_pad]
        b = p[2 * li + 1]                            # f32  [1, Fout_pad]
        acc = jnp.dot(h, w[...], preferred_element_type=jnp.float32)
        z = acc + b[...]
        if li < n_layers - 1:
            # ReLU; Dropout(0.5) on layers 4/5 is identity in eval mode.
            h = jnp.maximum(z, 0.0).astype(jnp.bfloat16)
        else:
            out_ref[...] = z.astype(out_ref.dtype)


# --------------------------------------------------------------------------- #
# One-time parameter preparation (hoisted out of the forward path)
# --------------------------------------------------------------------------- #
def prepare_params(params):
    """Fold BatchNorm into the Linear layers, zero-pad every feature dim to a
    multiple of 128 lanes, and cast the weights to bf16.

    Call ONCE at init and reuse the result; returns [W1, b1, ..., W6, b6].
    """
    folded = []
    for (w, b, g, beta, mean, var) in params[:-1]:          # layers 1..5
        scale = g * jax.lax.rsqrt(var + EPS)                 # [1, out]
        # NOTE: if running_var is extremely small, w*scale may lose precision
        # in bf16; keep such layers in f32 weights if that ever matters.
        w_f = w * scale                                      # scale out-columns
        b_f = (b - mean) * scale + beta
        folded.append((w_f, b_f))
    folded.append(params[-1])                                # layer 6: plain Linear

    flat = []
    for (w, b) in folded:
        fi, fo = w.shape
        fi_p, fo_p = _round_up(fi, LANE), _round_up(fo, LANE)
        w_p = jnp.zeros((fi_p, fo_p), jnp.float32).at[:fi, :fo].set(w)
        b_p = jnp.zeros((1, fo_p), jnp.float32).at[:, :fo].set(b)
        flat.append(w_p.astype(jnp.bfloat16))   # bf16 weights -> full-rate MXU
        flat.append(b_p)                        # f32 bias     -> f32 VALU add
    return flat


# --------------------------------------------------------------------------- #
# Forward wrapper (jit this; flat_params come from prepare_params)
# --------------------------------------------------------------------------- #
def complex_model_forward(x, flat_params, *, num_classes, batch_tile=None):
    B, F_in = x.shape
    flat = list(flat_params)

    F_in_pad = flat[0].shape[0]     # padded input features
    F_out_pad = flat[-2].shape[1]   # padded output features (>= 128)

    # Batch tile: multiple of 8 sublanes, capped at 512 rows, derived from B so
    # that (a) batches are never over-padded by ~2x and (b) once B > 64 there
    # are >= 4 grid steps (pipelined DMA + both v7x TensorCores busy).
    if batch_tile is None:
        n_steps = 4 if B > 64 else 1
        tb = max(SUBLANE, min(512, _round_up(pl.cdiv(B, n_steps), SUBLANE)))
    else:
        tb = batch_tile
        assert tb % SUBLANE == 0, "batch_tile must be a multiple of 8"
    B_pad = _round_up(B, tb)

    # Single fused pad+cast of x (bf16 -> half the input DMA bytes). Padded
    # rows/cols are zero; padded weight rows/cols are zero so they contribute
    # nothing, and padded output rows/cols are sliced off below.
    x_p = jnp.pad(x.astype(jnp.bfloat16),
                  ((0, B_pad - B), (0, F_in_pad - F_in)))

    x_spec = pl.BlockSpec((tb, F_in_pad), lambda i: (i, 0))
    # Replicated parameters: constant block index -> fetched once, no re-DMA.
    param_specs = [pl.BlockSpec(p.shape, lambda i: (0, 0)) for p in flat]
    out_spec = pl.BlockSpec((tb, F_out_pad), lambda i: (i, 0))

    # VMEM budget: resident params (x2 buffering headroom) + double-buffered
    # x/out tiles + margin, clamped to sane bounds.
    param_bytes = sum(int(np.prod(p.shape)) * p.dtype.itemsize for p in flat)
    io_bytes = 2 * (tb * F_in_pad * 2 + tb * F_out_pad * 4)
    vmem_limit = int(min(max(2 * param_bytes + io_bytes + (8 << 20), 32 << 20),
                         128 << 20))

    out = pl.pallas_call(
        mlp_kernel,
        out_shape=jax.ShapeDtypeStruct((B_pad, F_out_pad), jnp.float32),
        grid_spec=pltpu.PrefetchScalarGridSpec(
            num_scalar_prefetch=0,
            grid=(B_pad // tb,),
            in_specs=[x_spec] + param_specs,
            out_specs=out_spec,
        ),
        compiler_params=pltpu.CompilerParams(
            dimension_semantics=("parallel",),   # batch axis shards across TCs
            vmem_limit_bytes=vmem_limit,
        ),
    )(x_p, *flat)

    return out[:B, :num_classes]


# --------------------------------------------------------------------------- #
# Parameter init (mirrors nn.Linear / nn.BatchNorm1d defaults) and reference
# --------------------------------------------------------------------------- #
def init_params(key, input_size, hidden_size, num_classes):
    dims = [input_size, hidden_size, hidden_size * 2, hidden_size * 4,
            hidden_size * 2, hidden_size, num_classes]

    def linear(key, fan_in, fan_out):
        k1, k2 = jax.random.split(key)
        bound = 1.0 / np.sqrt(fan_in)
        w = jax.random.uniform(k1, (fan_in, fan_out), jnp.float32, -bound, bound)
        b = jax.random.uniform(k2, (1, fan_out), jnp.float32, -bound, bound)
        return w, b

    params = []
    keys = jax.random.split(key, 6)
    for li in range(5):  # layers 1..5: Linear + BatchNorm1d (+ReLU [+Dropout])
        fan_in, fan_out = dims[li], dims[li + 1]
        w, b = linear(keys[li], fan_in, fan_out)
        gamma = jnp.ones((1, fan_out), jnp.float32)
        beta = jnp.zeros((1, fan_out), jnp.float32)
        mean = jnp.zeros((1, fan_out), jnp.float32)
        var = jnp.ones((1, fan_out), jnp.float32)
        params.append((w, b, gamma, beta, mean, var))
    params.append(linear(keys[5], dims[5], dims[6]))
    return params


def reference_forward(x, params):
    """Pure-JAX f32 reference of the eval-mode forward pass."""
    h = x
    for (w, b, g, beta, mean, var) in params[:-1]:
        h = h @ w + b
        h = (h - mean) * (g * jax.lax.rsqrt(var + EPS)) + beta
        h = jnp.maximum(h, 0.0)
    w6, b6 = params[-1]
    return h @ w6 + b6


if __name__ == "__main__":
    # Small shapes consistent with the module's forward: x is [batch, input_size].
    batch = 8
    input_size = 32
    hidden_size = 32
    num_classes = 8

    key = jax.random.PRNGKey(0)
    kx, kp = jax.random.split(key)
    x = jax.random.normal(kx, (batch, input_size), jnp.float32)
    params = init_params(kp, input_size, hidden_size, num_classes)

    # Parameter prep (BN fold + pad + bf16 cast) runs ONCE, outside the forward.
    flat = jax.block_until_ready(prepare_params(params))

    fwd = jax.jit(functools.partial(complex_model_forward,
                                    num_classes=num_classes))
    out = jax.block_until_ready(fwd(x, flat))

    ref = reference_forward(x, params)
    # bf16 matmul inputs/activations (f32 accumulation) -> relaxed tolerance.
    np.testing.assert_allclose(np.asarray(out), np.asarray(ref),
                               rtol=5e-2, atol=5e-2)
    assert out.shape == (batch, num_classes)
    print("KERNEL_OK")
</pallas_src>

<mosaic_0001>
module attributes {stable_mosaic.version = 11 : i64} {
  func.func @mlp_kernel(%arg0: i32, %arg1: memref<8x128xbf16, #tpu.memory_space<vmem>>, %arg2: memref<128x128xbf16, #tpu.memory_space<vmem>>, %arg3: memref<1x128xf32, #tpu.memory_space<vmem>>, %arg4: memref<128x128xbf16, #tpu.memory_space<vmem>>, %arg5: memref<1x128xf32, #tpu.memory_space<vmem>>, %arg6: memref<128x128xbf16, #tpu.memory_space<vmem>>, %arg7: memref<1x128xf32, #tpu.memory_space<vmem>>, %arg8: memref<128x128xbf16, #tpu.memory_space<vmem>>, %arg9: memref<1x128xf32, #tpu.memory_space<vmem>>, %arg10: memref<128x128xbf16, #tpu.memory_space<vmem>>, %arg11: memref<1x128xf32, #tpu.memory_space<vmem>>, %arg12: memref<128x128xbf16, #tpu.memory_space<vmem>>, %arg13: memref<1x128xf32, #tpu.memory_space<vmem>>, %arg14: memref<8x128xf32, #tpu.memory_space<vmem>>) attributes {dimension_semantics = [#tpu.dimension_semantics<parallel>], iteration_bounds = array<i64: 1>, scalar_prefetch = 0 : i64, scratch_operands = 0 : i64, tpu.core_type = #tpu.core_type<tc>, window_params = [{transform_indices = @transform_0, window_bounds = array<i64: 8, 128>}, {pipeline_mode = #tpu.pipeline_mode<synchronous>, transform_indices = @transform_1, window_bounds = array<i64: 128, 128>}, {pipeline_mode = #tpu.pipeline_mode<synchronous>, transform_indices = @transform_2, window_bounds = array<i64: 1, 128>}, {pipeline_mode = #tpu.pipeline_mode<synchronous>, transform_indices = @transform_3, window_bounds = array<i64: 128, 128>}, {pipeline_mode = #tpu.pipeline_mode<synchronous>, transform_indices = @transform_4, window_bounds = array<i64: 1, 128>}, {pipeline_mode = #tpu.pipeline_mode<synchronous>, transform_indices = @transform_5, window_bounds = array<i64: 128, 128>}, {pipeline_mode = #tpu.pipeline_mode<synchronous>, transform_indices = @transform_6, window_bounds = array<i64: 1, 128>}, {pipeline_mode = #tpu.pipeline_mode<synchronous>, transform_indices = @transform_7, window_bounds = array<i64: 128, 128>}, {pipeline_mode = #tpu.pipeline_mode<synchronous>, transform_indices = @transform_8, window_bounds = array<i64: 1, 128>}, {pipeline_mode = #tpu.pipeline_mode<synchronous>, transform_indices = @transform_9, window_bounds = array<i64: 128, 128>}, {pipeline_mode = #tpu.pipeline_mode<synchronous>, transform_indices = @transform_10, window_bounds = array<i64: 1, 128>}, {pipeline_mode = #tpu.pipeline_mode<synchronous>, transform_indices = @transform_11, window_bounds = array<i64: 128, 128>}, {pipeline_mode = #tpu.pipeline_mode<synchronous>, transform_indices = @transform_12, window_bounds = array<i64: 1, 128>}, {transform_indices = @transform_13, window_bounds = array<i64: 8, 128>}]} {
    %c0 = arith.constant 0 : index
    %c0_0 = arith.constant 0 : index
    %0 = vector.load %arg1[%c0, %c0_0] : memref<8x128xbf16, #tpu.memory_space<vmem>>, vector<8x128xbf16>
    %c0_1 = arith.constant 0 : index
    %c0_2 = arith.constant 0 : index
    %1 = vector.load %arg2[%c0_1, %c0_2] : memref<128x128xbf16, #tpu.memory_space<vmem>>, vector<128x128xbf16>
    %cst = arith.constant dense<0.000000e+00> : vector<8x128xf32>
    %2 = tpu.matmul %0, %1, %cst {dimension_numbers = #tpu.dot_dimension_numbers<[1], [0], [0], [1], [0, 0, 1, 1], [], []>} : vector<8x128xbf16>, vector<128x128xbf16>, vector<8x128xf32> -> vector<8x128xf32>
    %c0_3 = arith.constant 0 : index
    %c0_4 = arith.constant 0 : index
    %3 = vector.load %arg3[%c0_3, %c0_4] : memref<1x128xf32, #tpu.memory_space<vmem>>, vector<1x128xf32>
    %4 = vector.broadcast %3 : vector<1x128xf32> to vector<8x128xf32>
    %5 = arith.addf %2, %4 : vector<8x128xf32>
    %cst_5 = arith.constant 0.000000e+00 : f32
    %6 = vector.broadcast %cst_5 : f32 to vector<8x128xf32>
    %7 = arith.maximumf %5, %6 : vector<8x128xf32>
    %8 = arith.truncf %7 : vector<8x128xf32> to vector<8x128xbf16>
    %c0_6 = arith.constant 0 : index
    %c0_7 = arith.constant 0 : index
    %9 = vector.load %arg4[%c0_6, %c0_7] : memref<128x128xbf16, #tpu.memory_space<vmem>>, vector<128x128xbf16>
    %cst_8 = arith.constant dense<0.000000e+00> : vector<8x128xf32>
    %10 = tpu.matmul %8, %9, %cst_8 {dimension_numbers = #tpu.dot_dimension_numbers<[1], [0], [0], [1], [0, 0, 1, 1], [], []>} : vector<8x128xbf16>, vector<128x128xbf16>, vector<8x128xf32> -> vector<8x128xf32>
    %c0_9 = arith.constant 0 : index
    %c0_10 = arith.constant 0 : index
    %11 = vector.load %arg5[%c0_9, %c0_10] : memref<1x128xf32, #tpu.memory_space<vmem>>, vector<1x128xf32>
    %12 = vector.broadcast %11 : vector<1x128xf32> to vector<8x128xf32>
    %13 = arith.addf %10, %12 : vector<8x128xf32>
    %cst_11 = arith.constant 0.000000e+00 : f32
    %14 = vector.broadcast %cst_11 : f32 to vector<8x128xf32>
    %15 = arith.maximumf %13, %14 : vector<8x128xf32>
    %16 = arith.truncf %15 : vector<8x128xf32> to vector<8x128xbf16>
    %c0_12 = arith.constant 0 : index
    %c0_13 = arith.constant 0 : index
    %17 = vector.load %arg6[%c0_12, %c0_13] : memref<128x128xbf16, #tpu.memory_space<vmem>>, vector<128x128xbf16>
    %cst_14 = arith.constant dense<0.000000e+00> : vector<8x128xf32>
    %18 = tpu.matmul %16, %17, %cst_14 {dimension_numbers = #tpu.dot_dimension_numbers<[1], [0], [0], [1], [0, 0, 1, 1], [], []>} : vector<8x128xbf16>, vector<128x128xbf16>, vector<8x128xf32> -> vector<8x128xf32>
    %c0_15 = arith.constant 0 : index
    %c0_16 = arith.constant 0 : index
    %19 = vector.load %arg7[%c0_15, %c0_16] : memref<1x128xf32, #tpu.memory_space<vmem>>, vector<1x128xf32>
    %20 = vector.broadcast %19 : vector<1x128xf32> to vector<8x128xf32>
    %21 = arith.addf %18, %20 : vector<8x128xf32>
    %cst_17 = arith.constant 0.000000e+00 : f32
    %22 = vector.broadcast %cst_17 : f32 to vector<8x128xf32>
    %23 = arith.maximumf %21, %22 : vector<8x128xf32>
    %24 = arith.truncf %23 : vector<8x128xf32> to vector<8x128xbf16>
    %c0_18 = arith.constant 0 : index
    %c0_19 = arith.constant 0 : index
    %25 = vector.load %arg8[%c0_18, %c0_19] : memref<128x128xbf16, #tpu.memory_space<vmem>>, vector<128x128xbf16>
    %cst_20 = arith.constant dense<0.000000e+00> : vector<8x128xf32>
    %26 = tpu.matmul %24, %25, %cst_20 {dimension_numbers = #tpu.dot_dimension_numbers<[1], [0], [0], [1], [0, 0, 1, 1], [], []>} : vector<8x128xbf16>, vector<128x128xbf16>, vector<8x128xf32> -> vector<8x128xf32>
    %c0_21 = arith.constant 0 : index
    %c0_22 = arith.constant 0 : index
    %27 = vector.load %arg9[%c0_21, %c0_22] : memref<1x128xf32, #tpu.memory_space<vmem>>, vector<1x128xf32>
    %28 = vector.broadcast %27 : vector<1x128xf32> to vector<8x128xf32>
    %29 = arith.addf %26, %28 : vector<8x128xf32>
    %cst_23 = arith.constant 0.000000e+00 : f32
    %30 = vector.broadcast %cst_23 : f32 to vector<8x128xf32>
    %31 = arith.maximumf %29, %30 : vector<8x128xf32>
    %32 = arith.truncf %31 : vector<8x128xf32> to vector<8x128xbf16>
    %c0_24 = arith.constant 0 : index
    %c0_25 = arith.constant 0 : index
    %33 = vector.load %arg10[%c0_24, %c0_25] : memref<128x128xbf16, #tpu.memory_space<vmem>>, vector<128x128xbf16>
    %cst_26 = arith.constant dense<0.000000e+00> : vector<8x128xf32>
    %34 = tpu.matmul %32, %33, %cst_26 {dimension_numbers = #tpu.dot_dimension_numbers<[1], [0], [0], [1], [0, 0, 1, 1], [], []>} : vector<8x128xbf16>, vector<128x128xbf16>, vector<8x128xf32> -> vector<8x128xf32>
    %c0_27 = arith.constant 0 : index
    %c0_28 = arith.constant 0 : index
    %35 = vector.load %arg11[%c0_27, %c0_28] : memref<1x128xf32, #tpu.memory_space<vmem>>, vector<1x128xf32>
    %36 = vector.broadcast %35 : vector<1x128xf32> to vector<8x128xf32>
    %37 = arith.addf %34, %36 : vector<8x128xf32>
    %cst_29 = arith.constant 0.000000e+00 : f32
    %38 = vector.broadcast %cst_29 : f32 to vector<8x128xf32>
    %39 = arith.maximumf %37, %38 : vector<8x128xf32>
    %40 = arith.truncf %39 : vector<8x128xf32> to vector<8x128xbf16>
    %c0_30 = arith.constant 0 : index
    %c0_31 = arith.constant 0 : index
    %41 = vector.load %arg12[%c0_30, %c0_31] : memref<128x128xbf16, #tpu.memory_space<vmem>>, vector<128x128xbf16>
    %cst_32 = arith.constant dense<0.000000e+00> : vector<8x128xf32>
    %42 = tpu.matmul %40, %41, %cst_32 {dimension_numbers = #tpu.dot_dimension_numbers<[1], [0], [0], [1], [0, 0, 1, 1], [], []>} : vector<8x128xbf16>, vector<128x128xbf16>, vector<8x128xf32> -> vector<8x128xf32>
    %c0_33 = arith.constant 0 : index
    %c0_34 = arith.constant 0 : index
    %43 = vector.load %arg13[%c0_33, %c0_34] : memref<1x128xf32, #tpu.memory_space<vmem>>, vector<1x128xf32>
    %44 = vector.broadcast %43 : vector<1x128xf32> to vector<8x128xf32>
    %45 = arith.addf %42, %44 : vector<8x128xf32>
    %c0_35 = arith.constant 0 : index
    %c0_36 = arith.constant 0 : index
    %46 = vector.load %arg14[%c0_35, %c0_36] : memref<8x128xf32, #tpu.memory_space<vmem>>, vector<8x128xf32>
    tpu.vector_store %arg14[%c0_35, %c0_36], %45 {strides = array<i32>} : memref<8x128xf32, #tpu.memory_space<vmem>>, vector<8x128xf32>,
    return
  }
  func.func @transform_0(%arg0: i32) -> (i32, i32) {
    %c0_i32 = arith.constant 0 : i32
    %c0_i32_0 = arith.constant 0 : i32
    return %arg0, %c0_i32 : i32, i32
  }
  func.func @transform_1(%arg0: i32) -> (i32, i32) {
    %c0_i32 = arith.constant 0 : i32
    %c0_i32_0 = arith.constant 0 : i32
    %c0_i32_1 = arith.constant 0 : i32
    return %c0_i32, %c0_i32_0 : i32, i32
  }
  func.func @transform_2(%arg0: i32) -> (i32, i32) {
    %c0_i32 = arith.constant 0 : i32
    %c0_i32_0 = arith.constant 0 : i32
    %c0_i32_1 = arith.constant 0 : i32
    return %c0_i32, %c0_i32_0 : i32, i32
  }
  func.func @transform_3(%arg0: i32) -> (i32, i32) {
    %c0_i32 = arith.constant 0 : i32
    %c0_i32_0 = arith.constant 0 : i32
    %c0_i32_1 = arith.constant 0 : i32
    return %c0_i32, %c0_i32_0 : i32, i32
  }
  func.func @transform_4(%arg0: i32) -> (i32, i32) {
    %c0_i32 = arith.constant 0 : i32
    %c0_i32_0 = arith.constant 0 : i32
    %c0_i32_1 = arith.constant 0 : i32
    return %c0_i32, %c0_i32_0 : i32, i32
  }
  func.func @transform_5(%arg0: i32) -> (i32, i32) {
    %c0_i32 = arith.constant 0 : i32
    %c0_i32_0 = arith.constant 0 : i32
    %c0_i32_1 = arith.constant 0 : i32
    return %c0_i32, %c0_i32_0 : i32, i32
  }
  func.func @transform_6(%arg0: i32) -> (i32, i32) {
    %c0_i32 = arith.constant 0 : i32
    %c0_i32_0 = arith.constant 0 : i32
    %c0_i32_1 = arith.constant 0 : i32
    return %c0_i32, %c0_i32_0 : i32, i32
  }
  func.func @transform_7(%arg0: i32) -> (i32, i32) {
    %c0_i32 = arith.constant 0 : i32
    %c0_i32_0 = arith.constant 0 : i32
    %c0_i32_1 = arith.constant 0 : i32
    return %c0_i32, %c0_i32_0 : i32, i32
  }
  func.func @transform_8(%arg0: i32) -> (i32, i32) {
    %c0_i32 = arith.constant 0 : i32
    %c0_i32_0 = arith.constant 0 : i32
    %c0_i32_1 = arith.constant 0 : i32
    return %c0_i32, %c0_i32_0 : i32, i32
  }
  func.func @transform_9(%arg0: i32) -> (i32, i32) {
    %c0_i32 = arith.constant 0 : i32
    %c0_i32_0 = arith.constant 0 : i32
    %c0_i32_1 = arith.constant 0 : i32
    return %c0_i32, %c0_i32_0 : i32, i32
  }
  func.func @transform_10(%arg0: i32) -> (i32, i32) {
    %c0_i32 = arith.constant 0 : i32
    %c0_i32_0 = arith.constant 0 : i32
    %c0_i32_1 = arith.constant 0 : i32
    return %c0_i32, %c0_i32_0 : i32, i32
  }
  func.func @transform_11(%arg0: i32) -> (i32, i32) {
    %c0_i32 = arith.constant 0 : i32
    %c0_i32_0 = arith.constant 0 : i32
    %c0_i32_1 = arith.constant 0 : i32
    return %c0_i32, %c0_i32_0 : i32, i32
  }
  func.func @transform_12(%arg0: i32) -> (i32, i32) {
    %c0_i32 = arith.constant 0 : i32
    %c0_i32_0 = arith.constant 0 : i32
    %c0_i32_1 = arith.constant 0 : i32
    return %c0_i32, %c0_i32_0 : i32, i32
  }
  func.func @transform_13(%arg0: i32) -> (i32, i32) {
    %c0_i32 = arith.constant 0 : i32
    %c0_i32_0 = arith.constant 0 : i32
    return %arg0, %c0_i32 : i32, i32
  }
}

</mosaic_0001>

<llo_original>
// kernel: complex_model_forward.1
$region0: #{complex_model_forward.1}
  #allocation0 [shape = 'u32[]', space=smem, size = 0x4, offset = 0x4, fixed_abs, tag = 'smem constant byte address 0x4 - core index']
  #allocation1 [shape = 'u32[144,128]{1,0:T(1,128)}', space=vmem, size = 0x12000, scoped, tag = 'internal scratch']
  %s0 = inlined_call_operand.vmem [shape: bf16[8,128], index: 0, kind: input, shape index: {}]
  %s1 = inlined_call_operand.hbm [shape: bf16[128,128], index: 1, kind: input, shape index: {}]
  %s2 = inlined_call_operand.vmem [shape: f32[1,128], index: 2, kind: input, shape index: {}]
  %s3 = inlined_call_operand.hbm [shape: bf16[128,128], index: 3, kind: input, shape index: {}]
  %s4 = inlined_call_operand.vmem [shape: f32[1,128], index: 4, kind: input, shape index: {}]
  %s5 = inlined_call_operand.hbm [shape: bf16[128,128], index: 5, kind: input, shape index: {}]
  %s6 = inlined_call_operand.vmem [shape: f32[1,128], index: 6, kind: input, shape index: {}]
  %s7 = inlined_call_operand.hbm [shape: bf16[128,128], index: 7, kind: input, shape index: {}]
  %s8 = inlined_call_operand.vmem [shape: f32[1,128], index: 8, kind: input, shape index: {}]
  %s9 = inlined_call_operand.hbm [shape: bf16[128,128], index: 9, kind: input, shape index: {}]
  %s10 = inlined_call_operand.vmem [shape: f32[1,128], index: 10, kind: input, shape index: {}]
  %s11 = inlined_call_operand.hbm [shape: bf16[128,128], index: 11, kind: input, shape index: {}]
  %s12 = inlined_call_operand.vmem [shape: f32[1,128], index: 12, kind: input, shape index: {}]
  %s13 = inlined_call_operand.hbm [shape: f32[8,128], index: 13, kind: output, shape index: {}]
  %s14 = sld [smem:[#allocation0]]
  $region86: #{complex_model_forward.1} parent=0
    _
  %s16 = ssub.s32 1, %s14
  %s17 = scalar_select 0, %s16, %s14
  $region1: #{complex_model_forward.1} parent=0
    #allocation2 [shape = 'u8[32768]{0}', space=vmem, size = 0x8000, scoped, tag = 'input window, operand 1, single buffered']
    #allocation3 [shape = 's32[1]{0}', space=sflag, size = 0x4, scoped, tag = 'scoped memory for complex_model_forward.1']
    #allocation4 [shape = 's32[1]{0}', space=sflag, size = 0x4, scoped, tag = 'scoped memory for complex_model_forward.1']
    #allocation5 [shape = 'u8[32768]{0}', space=vmem, size = 0x8000, scoped, tag = 'input window, operand 3, single buffered']
    #allocation6 [shape = 's32[1]{0}', space=sflag, size = 0x4, scoped, tag = 'scoped memory for complex_model_forward.1']
    #allocation7 [shape = 'u8[32768]{0}', space=vmem, size = 0x8000, scoped, tag = 'input window, operand 5, single buffered']
    #allocation8 [shape = 'u8[32768]{0}', space=vmem, size = 0x8000, scoped, tag = 'input window, operand 7, single buffered']
    #allocation9 [shape = 's32[1]{0}', space=sflag, size = 0x4, scoped, tag = 'scoped memory for complex_model_forward.1']
    #allocation10 [shape = 'u8[32768]{0}', space=vmem, size = 0x8000, scoped, tag = 'input window, operand 9, single buffered']
    #allocation11 [shape = 'u8[32768]{0}', space=vmem, size = 0x8000, scoped, tag = 'input window, operand 11, single buffered']
    #allocation12 [shape = 's32[1]{0}', space=sflag, size = 0x4, scoped, tag = 'scoped memory for complex_model_forward.1']
    #allocation13 [shape = 'u8[4096]{0}', space=vmem, size = 0x1000, scoped, tag = 'output window, operand 0, single buffered']
    %18 = vsyncpa [#allocation3], 0
    %19 = vsyncpa [#allocation6], 0
    %20 = vsyncpa [#allocation9], 0
    %21 = vsyncpa [#allocation12], 0
    %22 = vsyncpa [#allocation4], 0
    // Predicated region
    $region2: #{complex_model_forward.1} parent=1 // pred_check
      _
    $region3: #{complex_model_forward.1} parent=1 // pred_check_branch
      %24 = sbr.rel (0) target = $region5
    $region4: #{complex_model_forward.1} parent=1 // pred_region
      _
    $region5: #{complex_model_forward.1} parent=1 // pred_fallthru
      _
    // Predicated region
    $region6: #{complex_model_forward.1} parent=1 // pred_check
      _
    $region7: #{complex_model_forward.1} parent=1 // pred_check_branch
      %26 = sbr.rel (0) target = $region9
    $region8: #{complex_model_forward.1} parent=1 // pred_region
      %s28 = ssub.s32 1024, 1024
      %29 = vsyncadd [#allocation3], %s28
      %s30 = sshll.u32 [#allocation2], 4
      %s31 = int_to_ptr.vmem [resolvable:$true] %s30
      %36 = dma.hbm_to_vmem [thread:$0]  %s1, 1024, %s31, [#allocation3], 64, 64, 4
    $region9: #{complex_model_forward.1} parent=1 // pred_fallthru
      _
    // Predicated region
    $region10: #{complex_model_forward.1} parent=1 // pred_check
      _
    $region11: #{complex_model_forward.1} parent=1 // pred_check_branch
      %38 = sbr.rel (0) target = $region13
    $region12: #{complex_model_forward.1} parent=1 // pred_region
      _
    $region13: #{complex_model_forward.1} parent=1 // pred_fallthru
      _
    // Predicated region
    $region14: #{complex_model_forward.1} parent=1 // pred_check
      _
    $region15: #{complex_model_forward.1} parent=1 // pred_check_branch
      %40 = sbr.rel (0) target = $region17
    $region16: #{complex_model_forward.1} parent=1 // pred_region
      %s42 = ssub.s32 1024, 1024
      %43 = vsyncadd [#allocation6], %s42
      %s44 = sshll.u32 [#allocation5], 4
      %s45 = int_to_ptr.vmem [resolvable:$true] %s44
      %50 = dma.hbm_to_vmem [thread:$0]  %s3, 1024, %s45, [#allocation6], 64, 64, 4
    $region17: #{complex_model_forward.1} parent=1 // pred_fallthru
      _
    // Predicated region
    $region18: #{complex_model_forward.1} parent=1 // pred_check
      _
    $region19: #{complex_model_forward.1} parent=1 // pred_check_branch
      %52 = sbr.rel (0) target = $region21
    $region20: #{complex_model_forward.1} parent=1 // pred_region
      _
    $region21: #{complex_model_forward.1} parent=1 // pred_fallthru
      _
    // Predicated region
    $region22: #{complex_model_forward.1} parent=1 // pred_check
      _
    $region23: #{complex_model_forward.1} parent=1 // pred_check_branch
      %54 = sbr.rel (0) target = $region25
    $region24: #{complex_model_forward.1} parent=1 // pred_region
      %s56 = ssub.s32 1024, 1024
      %57 = vsyncadd [#allocation6], %s56
      %s58 = sshll.u32 [#allocation7], 4
      %s59 = int_to_ptr.vmem [resolvable:$true] %s58
      %64 = dma.hbm_to_vmem [thread:$0]  %s5, 1024, %s59, [#allocation6], 64, 64, 4
    $region25: #{complex_model_forward.1} parent=1 // pred_fallthru
      _
    // Predicated region
    $region26: #{complex_model_forward.1} parent=1 // pred_check
      _
    $region27: #{complex_model_forward.1} parent=1 // pred_check_branch
      %66 = sbr.rel (0) target = $region29
    $region28: #{complex_model_forward.1} parent=1 // pred_region
      _
    $region29: #{complex_model_forward.1} parent=1 // pred_fallthru
      _
    // Predicated region
    $region30: #{complex_model_forward.1} parent=1 // pred_check
      _
    $region31: #{complex_model_forward.1} parent=1 // pred_check_branch
      %68 = sbr.rel (0) target = $region33
    $region32: #{complex_model_forward.1} parent=1 // pred_region
      %s70 = ssub.s32 1024, 1024
      %71 = vsyncadd [#allocation9], %s70
      %s72 = sshll.u32 [#allocation8], 4
      %s73 = int_to_ptr.vmem [resolvable:$true] %s72
      %78 = dma.hbm_to_vmem [thread:$0]  %s7, 1024, %s73, [#allocation9], 64, 64, 4
    $region33: #{complex_model_forward.1} parent=1 // pred_fallthru
      _
    // Predicated region
    $region34: #{complex_model_forward.1} parent=1 // pred_check
      _
    $region35: #{complex_model_forward.1} parent=1 // pred_check_branch
      %80 = sbr.rel (0) target = $region37
    $region36: #{complex_model_forward.1} parent=1 // pred_region
      _
    $region37: #{complex_model_forward.1} parent=1 // pred_fallthru
      _
    // Predicated region
    $region38: #{complex_model_forward.1} parent=1 // pred_check
      _
    $region39: #{complex_model_forward.1} parent=1 // pred_check_branch
      %82 = sbr.rel (0) target = $region41
    $region40: #{complex_model_forward.1} parent=1 // pred_region
      %s84 = ssub.s32 1024, 1024
      %85 = vsyncadd [#allocation9], %s84
      %s86 = sshll.u32 [#allocation10], 4
      %s87 = int_to_ptr.vmem [resolvable:$true] %s86
      %92 = dma.hbm_to_vmem [thread:$0]  %s9, 1024, %s87, [#allocation9], 64, 64, 4
    $region41: #{complex_model_forward.1} parent=1 // pred_fallthru
      _
    // Predicated region
    $region42: #{complex_model_forward.1} parent=1 // pred_check
      _
    $region43: #{complex_model_forward.1} parent=1 // pred_check_branch
      %94 = sbr.rel (0) target = $region45
    $region44: #{complex_model_forward.1} parent=1 // pred_region
      _
    $region45: #{complex_model_forward.1} parent=1 // pred_fallthru
      _
    // Predicated region
    $region46: #{complex_model_forward.1} parent=1 // pred_check
      _
    $region47: #{complex_model_forward.1} parent=1 // pred_check_branch
      %96 = sbr.rel (0) target = $region49
    $region48: #{complex_model_forward.1} parent=1 // pred_region
      %s98 = ssub.s32 1024, 1024
      %99 = vsyncadd [#allocation12], %s98
      %s100 = sshll.u32 [#allocation11], 4
      %s101 = int_to_ptr.vmem [resolvable:$true] %s100
      %106 = dma.hbm_to_vmem [thread:$0]  %s11, 1024, %s101, [#allocation12], 64, 64, 4
    $region49: #{complex_model_forward.1} parent=1 // pred_fallthru
      _
    // Predicated region
    $region50: #{complex_model_forward.1} parent=1 // pred_check
      _
    $region51: #{complex_model_forward.1} parent=1 // pred_check_branch
      %108 = sbr.rel (0) target = $region53
    $region52: #{complex_model_forward.1} parent=1 // pred_region
      _
    $region53: #{complex_model_forward.1} parent=1 // pred_fallthru
      _
    // Predicated region
    $region54: #{complex_model_forward.1} parent=1 // pred_check
      _
    $region55: #{complex_model_forward.1} parent=1 // pred_check_branch
      %110 = sbr.rel (0) target = $region57
    $region56: #{complex_model_forward.1} parent=1 // pred_region
      %111 = dma.done [#allocation3], 1024
    $region57: #{complex_model_forward.1} parent=1 // pred_fallthru
      _
    // Predicated region
    $region58: #{complex_model_forward.1} parent=1 // pred_check
      _
    $region59: #{complex_model_forward.1} parent=1 // pred_check_branch
      %113 = sbr.rel (0) target = $region61
    $region60: #{complex_model_forward.1} parent=1 // pred_region
      %114 = dma.done [#allocation6], 1024
    $region61: #{complex_model_forward.1} parent=1 // pred_fallthru
      _
    // Predicated region
    $region62: #{complex_model_forward.1} parent=1 // pred_check
      _
    $region63: #{complex_model_forward.1} parent=1 // pred_check_branch
      %116 = sbr.rel (0) target = $region65
    $region64: #{complex_model_forward.1} parent=1 // pred_region
      %117 = dma.done [#allocation6], 1024
    $region65: #{complex_model_forward.1} parent=1 // pred_fallthru
      _
    // Predicated region
    $region66: #{complex_model_forward.1} parent=1 // pred_check
      _
    $region67: #{complex_model_forward.1} parent=1 // pred_check_branch
      %119 = sbr.rel (0) target = $region69
    $region68: #{complex_model_forward.1} parent=1 // pred_region
      %120 = dma.done [#allocation9], 1024
    $region69: #{complex_model_forward.1} parent=1 // pred_fallthru
      _
    // Predicated region
    $region70: #{complex_model_forward.1} parent=1 // pred_check
      _
    $region71: #{complex_model_forward.1} parent=1 // pred_check_branch
      %122 = sbr.rel (0) target = $region73
    $region72: #{complex_model_forward.1} parent=1 // pred_region
      %123 = dma.done [#allocation9], 1024
    $region73: #{complex_model_forward.1} parent=1 // pred_fallthru
      _
    // Predicated region
    $region74: #{complex_model_forward.1} parent=1 // pred_check
      _
    $region75: #{complex_model_forward.1} parent=1 // pred_check_branch
      %125 = sbr.rel (0) target = $region77
    $region76: #{complex_model_forward.1} parent=1 // pred_region
      %126 = dma.done [#allocation12], 1024
    $region77: #{complex_model_forward.1} parent=1 // pred_fallthru
      _
    %v128 = vld [vmem:[%s0] sm:$0xf]
    %v129 = vld [vmem:[#allocation2] sm:$0xf]
    %v130 = vld [vmem:[#allocation2 + $0x4] sm:$0xf]
    %v131 = vld [vmem:[#allocation2 + $0x8] sm:$0xf]
    %v132 = vld [vmem:[#allocation2 + $0xc] sm:$0xf]
    %v133 = vld [vmem:[#allocation2 + $0x10] sm:$0xf]
    %v134 = vld [vmem:[#allocation2 + $0x14] sm:$0xf]
    %v135 = vld [vmem:[#allocation2 + $0x18] sm:$0xf]
    %v136 = vld [vmem:[#allocation2 + $0x1c] sm:$0xf]
    %v137 = vld [vmem:[#allocation2 + $0x20] sm:$0xf]
    %v138 = vld [vmem:[#allocation2 + $0x24] sm:$0xf]
    %v139 = vld [vmem:[#allocation2 + $0x28] sm:$0xf]
    %v140 = vld [vmem:[#allocation2 + $0x2c] sm:$0xf]
    %v141 = vld [vmem:[#allocation2 + $0x30] sm:$0xf]
    %v142 = vld [vmem:[#allocation2 + $0x34] sm:$0xf]
    %v143 = vld [vmem:[#allocation2 + $0x38] sm:$0xf]
    %v144 = vld [vmem:[#allocation2 + $0x3c] sm:$0xf]
    %v145 = vld [vmem:[%s2] sm:$0x1]
    %v147 = vlaneseq
    %v148 = vshrl.u32 %v147, 7
    %v149 = vsub.s32 0, %v148
    %v150 = vrot.slane %v145, %v149
    %v168 = vunpack.c.l.b16 %v129
    %v169 = vunpack.c.l.b16 %v130
    %v170 = vunpack.c.l.b16 %v131
    %v171 = vunpack.c.l.b16 %v132
    %v172 = vunpack.c.l.b16 %v133
    %v173 = vunpack.c.l.b16 %v134
    %v174 = vunpack.c.l.b16 %v135
    %v175 = vunpack.c.l.b16 %v136
    %v176 = vunpack.c.l.b16 %v137
    %v177 = vunpack.c.l.b16 %v138
    %v178 = vunpack.c.l.b16 %v139
    %v179 = vunpack.c.l.b16 %v140
    %v180 = vunpack.c.l.b16 %v141
    %v181 = vunpack.c.l.b16 %v142
    %v182 = vunpack.c.l.b16 %v143
    %v183 = vunpack.c.l.b16 %v144
    %v184 = vpack.c.b16 %v169, %v168
    %v185 = vpack.c.b16 %v171, %v170
    %v186 = vpack.c.b16 %v173, %v172
    %v187 = vpack.c.b16 %v175, %v174
    %v188 = vpack.c.b16 %v177, %v176
    %v189 = vpack.c.b16 %v179, %v178
    %v190 = vpack.c.b16 %v181, %v180
    %v191 = vpack.c.b16 %v183, %v182
    %200 = vmatprep.subr.bf16.mxu0 0
    %201 = vmatpush1.bf16.msra.mxu0 %v184
    %202 = vmatprep.subr.bf16.mxu0 0
    %203 = vmatpush1.bf16.msra.mxu0 %v185
    %204 = vmatprep.subr.bf16.mxu0 0
    %205 = vmatpush1.bf16.msra.mxu0 %v186
    %206 = vmatprep.subr.bf16.mxu0 0
    %207 = vmatpush1.bf16.msra.mxu0 %v187
    %208 = vmatprep.subr.bf16.mxu0 0
    %209 = vmatpush1.bf16.msra.mxu0 %v188
    %210 = vmatprep.subr.bf16.mxu0 0
    %211 = vmatpush1.bf16.msra.mxu0 %v189
    %212 = vmatprep.subr.bf16.mxu0 0
    %213 = vmatpush1.bf16.msra.mxu0 %v190
    %214 = vmatprep.subr.bf16.mxu0 0
    %215 = vmatpush1.bf16.msra.mxu0 %v191
    %216 = vmatprep.subr.bf16.mxu0 0
    %217 = vmatpush1.bf16.msra.mxu0 0
    %218 = vmatprep.subr.bf16.mxu0 0
    %219 = vmatpush1.bf16.msra.mxu0 0
    %220 = vmatprep.subr.bf16.mxu0 0
    %221 = vmatpush1.bf16.msra.mxu0 0
    %222 = vmatprep.subr.bf16.mxu0 0
    %223 = vmatpush1.bf16.msra.mxu0 0
    %224 = vmatprep.subr.bf16.mxu0 0
    %225 = vmatpush1.bf16.msra.mxu0 0
    %226 = vmatprep.subr.bf16.mxu0 0
    %227 = vmatpush1.bf16.msra.mxu0 0
    %228 = vmatprep.subr.bf16.mxu0 0
    %229 = vmatpush1.bf16.msra.mxu0 0
    %230 = vmatprep.subr.bf16.mxu0 0
    %231 = vmatpush1.bf16.msra.mxu0 0
    %232 = vmatprep.mubr.bf16.mxu0 0
    %233 = vmatmul.mubr.bf16.gmra.mrb[0].mxu0 %v128
    %v234 = vpop.f32.mrb[0].mxu0
    %v235 = vadd.f32 %v150, %v234
    %v236 = vpop.f32.mrb[0].mxu0
    %v237 = vpop.f32.mrb[0].mxu0
    %v238 = vpop.f32.mrb[0].mxu0
    %239 = vdwg.mxu0
    %v240 = vmax.f32 %v235, 0.0
    %v241 = vpack.c.bf16 %v240, %v240
    %v242 = vld [vmem:[#allocation5] sm:$0xf]
    %v243 = vld [vmem:[#allocation5 + $0x4] sm:$0xf]
    %v244 = vld [vmem:[#allocation5 + $0x8] sm:$0xf]
    %v245 = vld [vmem:[#allocation5 + $0xc] sm:$0xf]
    %v246 = vld [vmem:[#allocation5 + $0x10] sm:$0xf]
    %v247 = vld [vmem:[#allocation5 + $0x14] sm:$0xf]
    %v248 = vld [vmem:[#allocation5 + $0x18] sm:$0xf]
    %v249 = vld [vmem:[#allocation5 + $0x1c] sm:$0xf]
    %v250 = vld [vmem:[#allocation5 + $0x20] sm:$0xf]
    %v251 = vld [vmem:[#allocation5 + $0x24] sm:$0xf]
    %v252 = vld [vmem:[#allocation5 + $0x28] sm:$0xf]
    %v253 = vld [vmem:[#allocation5 + $0x2c] sm:$0xf]
    %v254 = vld [vmem:[#allocation5 + $0x30] sm:$0xf]
    %v255 = vld [vmem:[#allocation5 + $0x34] sm:$0xf]
    %v256 = vld [vmem:[#allocation5 + $0x38] sm:$0xf]
    %v257 = vld [vmem:[#allocation5 + $0x3c] sm:$0xf]
    %v258 = vld [vmem:[%s4] sm:$0x1]
    %v260 = vlaneseq
    %v261 = vshrl.u32 %v260, 7
    %v262 = vsub.s32 0, %v261
    %v263 = vrot.slane %v258, %v262
    %v281 = vunpack.c.l.b16 %v242
    %v282 = vunpack.c.l.b16 %v243
    %v283 = vunpack.c.l.b16 %v244
    %v284 = vunpack.c.l.b16 %v245
    %v285 = vunpack.c.l.b16 %v246
    %v286 = vunpack.c.l.b16 %v247
    %v287 = vunpack.c.l.b16 %v248
    %v288 = vunpack.c.l.b16 %v249
    %v289 = vunpack.c.l.b16 %v250
    %v290 = vunpack.c.l.b16 %v251
    %v291 = vunpack.c.l.b16 %v252
    %v292 = vunpack.c.l.b16 %v253
    %v293 = vunpack.c.l.b16 %v254
    %v294 = vunpack.c.l.b16 %v255
    %v295 = vunpack.c.l.b16 %v256
    %v296 = vunpack.c.l.b16 %v257
    %v297 = vpack.c.b16 %v282, %v281
    %v298 = vpack.c.b16 %v284, %v283
    %v299 = vpack.c.b16 %v286, %v285
    %v300 = vpack.c.b16 %v288, %v287
    %v301 = vpack.c.b16 %v290, %v289
    %v302 = vpack.c.b16 %v292, %v291
    %v303 = vpack.c.b16 %v294, %v293
    %v304 = vpack.c.b16 %v296, %v295
    %313 = vmatprep.subr.bf16.mxu0 0
    %314 = vmatpush1.bf16.msra.mxu0 %v297
    %315 = vmatprep.subr.bf16.mxu0 0
    %316 = vmatpush1.bf16.msra.mxu0 %v298
    %317 = vmatprep.subr.bf16.mxu0 0
    %318 = vmatpush1.bf16.msra.mxu0 %v299
    %319 = vmatprep.subr.bf16.mxu0 0
    %320 = vmatpush1.bf16.msra.mxu0 %v300
    %321 = vmatprep.subr.bf16.mxu0 0
    %322 = vmatpush1.bf16.msra.mxu0 %v301
    %323 = vmatprep.subr.bf16.mxu0 0
    %324 = vmatpush1.bf16.msra.mxu0 %v302
    %325 = vmatprep.subr.bf16.mxu0 0
    %326 = vmatpush1.bf16.msra.mxu0 %v303
    %327 = vmatprep.subr.bf16.mxu0 0
    %328 = vmatpush1.bf16.msra.mxu0 %v304
    %329 = vmatprep.subr.bf16.mxu0 0
    %330 = vmatpush1.bf16.msra.mxu0 0
    %331 = vmatprep.subr.bf16.mxu0 0
    %332 = vmatpush1.bf16.msra.mxu0 0
    %333 = vmatprep.subr.bf16.mxu0 0
    %334 = vmatpush1.bf16.msra.mxu0 0
    %335 = vmatprep.subr.bf16.mxu0 0
    %336 = vmatpush1.bf16.msra.mxu0 0
    %337 = vmatprep.subr.bf16.mxu0 0
    %338 = vmatpush1.bf16.msra.mxu0 0
    %339 = vmatprep.subr.bf16.mxu0 0
    %340 = vmatpush1.bf16.msra.mxu0 0
    %341 = vmatprep.subr.bf16.mxu0 0
    %342 = vmatpush1.bf16.msra.mxu0 0
    %343 = vmatprep.subr.bf16.mxu0 0
    %344 = vmatpush1.bf16.msra.mxu0 0
    %345 = vmatprep.mubr.bf16.mxu0 0
    %346 = vmatmul.mubr.bf16.gmra.mrb[0].mxu0 %v241
    %v347 = vpop.f32.mrb[0].mxu0
    %v348 = vadd.f32 %v263, %v347
    %v349 = vpop.f32.mrb[0].mxu0
    %v350 = vpop.f32.mrb[0].mxu0
    %v351 = vpop.f32.mrb[0].mxu0
    %352 = vdwg.mxu0
    %v353 = vmax.f32 %v348, 0.0
    %v354 = vpack.c.bf16 %v353, %v353
    %v355 = vld [vmem:[#allocation7] sm:$0xf]
    %v356 = vld [vmem:[#allocation7 + $0x4] sm:$0xf]
    %v357 = vld [vmem:[#allocation7 + $0x8] sm:$0xf]
    %v358 = vld [vmem:[#allocation7 + $0xc] sm:$0xf]
    %v359 = vld [vmem:[#allocation7 + $0x10] sm:$0xf]
    %v360 = vld [vmem:[#allocation7 + $0x14] sm:$0xf]
    %v361 = vld [vmem:[#allocation7 + $0x18] sm:$0xf]
    %v362 = vld [vmem:[#allocation7 + $0x1c] sm:$0xf]
    %v363 = vld [vmem:[#allocation7 + $0x20] sm:$0xf]
    %v364 = vld [vmem:[#allocation7 + $0x24] sm:$0xf]
    %v365 = vld [vmem:[#allocation7 + $0x28] sm:$0xf]
    %v366 = vld [vmem:[#allocation7 + $0x2c] sm:$0xf]
    %v367 = vld [vmem:[#allocation7 + $0x30] sm:$0xf]
    %v368 = vld [vmem:[#allocation7 + $0x34] sm:$0xf]
    %v369 = vld [vmem:[#allocation7 + $0x38] sm:$0xf]
    %v370 = vld [vmem:[#allocation7 + $0x3c] sm:$0xf]
    %v371 = vld [vmem:[%s6] sm:$0x1]
    %v373 = vlaneseq
    %v374 = vshrl.u32 %v373, 7
    %v375 = vsub.s32 0, %v374
    %v376 = vrot.slane %v371, %v375
    %v394 = vunpack.c.l.b16 %v355
    %v395 = vunpack.c.l.b16 %v356
    %v396 = vunpack.c.l.b16 %v357
    %v397 = vunpack.c.l.b16 %v358
    %v398 = vunpack.c.l.b16 %v359
    %v399 = vunpack.c.l.b16 %v360
    %v400 = vunpack.c.l.b16 %v361
    %v401 = vunpack.c.l.b16 %v362
    %v402 = vunpack.c.l.b16 %v363
    %v403 = vunpack.c.l.b16 %v364
    %v404 = vunpack.c.l.b16 %v365
    %v405 = vunpack.c.l.b16 %v366
    %v406 = vunpack.c.l.b16 %v367
    %v407 = vunpack.c.l.b16 %v368
    %v408 = vunpack.c.l.b16 %v369
    %v409 = vunpack.c.l.b16 %v370
    %v410 = vpack.c.b16 %v395, %v394
    %v411 = vpack.c.b16 %v397, %v396
    %v412 = vpack.c.b16 %v399, %v398
    %v413 = vpack.c.b16 %v401, %v400
    %v414 = vpack.c.b16 %v403, %v402
    %v415 = vpack.c.b16 %v405, %v404
    %v416 = vpack.c.b16 %v407, %v406
    %v417 = vpack.c.b16 %v409, %v408
    %426 = vmatprep.subr.bf16.mxu0 0
    %427 = vmatpush1.bf16.msra.mxu0 %v410
    %428 = vmatprep.subr.bf16.mxu0 0
    %429 = vmatpush1.bf16.msra.mxu0 %v411
    %430 = vmatprep.subr.bf16.mxu0 0
    %431 = vmatpush1.bf16.msra.mxu0 %v412
    %432 = vmatprep.subr.bf16.mxu0 0
    %433 = vmatpush1.bf16.msra.mxu0 %v413
    %434 = vmatprep.subr.bf16.mxu0 0
    %435 = vmatpush1.bf16.msra.mxu0 %v414
    %436 = vmatprep.subr.bf16.mxu0 0
    %437 = vmatpush1.bf16.msra.mxu0 %v415
    %438 = vmatprep.subr.bf16.mxu0 0
    %439 = vmatpush1.bf16.msra.mxu0 %v416
    %440 = vmatprep.subr.bf16.mxu0 0
    %441 = vmatpush1.bf16.msra.mxu0 %v417
    %442 = vmatprep.subr.bf16.mxu0 0
    %443 = vmatpush1.bf16.msra.mxu0 0
    %444 = vmatprep.subr.bf16.mxu0 0
    %445 = vmatpush1.bf16.msra.mxu0 0
    %446 = vmatprep.subr.bf16.mxu0 0
    %447 = vmatpush1.bf16.msra.mxu0 0
    %448 = vmatprep.subr.bf16.mxu0 0
    %449 = vmatpush1.bf16.msra.mxu0 0
    %450 = vmatprep.subr.bf16.mxu0 0
    %451 = vmatpush1.bf16.msra.mxu0 0
    %452 = vmatprep.subr.bf16.mxu0 0
    %453 = vmatpush1.bf16.msra.mxu0 0
    %454 = vmatprep.subr.bf16.mxu0 0
    %455 = vmatpush1.bf16.msra.mxu0 0
    %456 = vmatprep.subr.bf16.mxu0 0
    %457 = vmatpush1.bf16.msra.mxu0 0
    %458 = vmatprep.mubr.bf16.mxu0 0
    %459 = vmatmul.mubr.bf16.gmra.mrb[0].mxu0 %v354
    %v460 = vpop.f32.mrb[0].mxu0
    %v461 = vadd.f32 %v376, %v460
    %v462 = vpop.f32.mrb[0].mxu0
    %v463 = vpop.f32.mrb[0].mxu0
    %v464 = vpop.f32.mrb[0].mxu0
    %465 = vdwg.mxu0
    %v466 = vmax.f32 %v461, 0.0
    %v467 = vpack.c.bf16 %v466, %v466
    %v468 = vld [vmem:[#allocation8] sm:$0xf]
    %v469 = vld [vmem:[#allocation8 + $0x4] sm:$0xf]
    %v470 = vld [vmem:[#allocation8 + $0x8] sm:$0xf]
    %v471 = vld [vmem:[#allocation8 + $0xc] sm:$0xf]
    %v472 = vld [vmem:[#allocation8 + $0x10] sm:$0xf]
    %v473 = vld [vmem:[#allocation8 + $0x14] sm:$0xf]
    %v474 = vld [vmem:[#allocation8 + $0x18] sm:$0xf]
    %v475 = vld [vmem:[#allocation8 + $0x1c] sm:$0xf]
    %v476 = vld [vmem:[#allocation8 + $0x20] sm:$0xf]
    %v477 = vld [vmem:[#allocation8 + $0x24] sm:$0xf]
    %v478 = vld [vmem:[#allocation8 + $0x28] sm:$0xf]
    %v479 = vld [vmem:[#allocation8 + $0x2c] sm:$0xf]
    %v480 = vld [vmem:[#allocation8 + $0x30] sm:$0xf]
    %v481 = vld [vmem:[#allocation8 + $0x34] sm:$0xf]
    %v482 = vld [vmem:[#allocation8 + $0x38] sm:$0xf]
    %v483 = vld [vmem:[#allocation8 + $0x3c] sm:$0xf]
    %v484 = vld [vmem:[%s8] sm:$0x1]
    %v486 = vlaneseq
    %v487 = vshrl.u32 %v486, 7
    %v488 = vsub.s32 0, %v487
    %v489 = vrot.slane %v484, %v488
    %v507 = vunpack.c.l.b16 %v468
    %v508 = vunpack.c.l.b16 %v469
    %v509 = vunpack.c.l.b16 %v470
    %v510 = vunpack.c.l.b16 %v471
    %v511 = vunpack.c.l.b16 %v472
    %v512 = vunpack.c.l.b16 %v473
    %v513 = vunpack.c.l.b16 %v474
    %v514 = vunpack.c.l.b16 %v475
    %v515 = vunpack.c.l.b16 %v476
    %v516 = vunpack.c.l.b16 %v477
    %v517 = vunpack.c.l.b16 %v478
    %v518 = vunpack.c.l.b16 %v479
    %v519 = vunpack.c.l.b16 %v480
    %v520 = vunpack.c.l.b16 %v481
    %v521 = vunpack.c.l.b16 %v482
    %v522 = vunpack.c.l.b16 %v483
    %v523 = vpack.c.b16 %v508, %v507
    %v524 = vpack.c.b16 %v510, %v509
    %v525 = vpack.c.b16 %v512, %v511
    %v526 = vpack.c.b16 %v514, %v513
    %v527 = vpack.c.b16 %v516, %v515
    %v528 = vpack.c.b16 %v518, %v517
    %v529 = vpack.c.b16 %v520, %v519
    %v530 = vpack.c.b16 %v522, %v521
    %539 = vmatprep.subr.bf16.mxu0 0
    %540 = vmatpush1.bf16.msra.mxu0 %v523
    %541 = vmatprep.subr.bf16.mxu0 0
    %542 = vmatpush1.bf16.msra.mxu0 %v524
    %543 = vmatprep.subr.bf16.mxu0 0
    %544 = vmatpush1.bf16.msra.mxu0 %v525
    %545 = vmatprep.subr.bf16.mxu0 0
    %546 = vmatpush1.bf16.msra.mxu0 %v526
    %547 = vmatprep.subr.bf16.mxu0 0
    %548 = vmatpush1.bf16.msra.mxu0 %v527
    %549 = vmatprep.subr.bf16.mxu0 0
    %550 = vmatpush1.bf16.msra.mxu0 %v528
    %551 = vmatprep.subr.bf16.mxu0 0
    %552 = vmatpush1.bf16.msra.mxu0 %v529
    %553 = vmatprep.subr.bf16.mxu0 0
    %554 = vmatpush1.bf16.msra.mxu0 %v530
    %555 = vmatprep.subr.bf16.mxu0 0
    %556 = vmatpush1.bf16.msra.mxu0 0
    %557 = vmatprep.subr.bf16.mxu0 0
    %558 = vmatpush1.bf16.msra.mxu0 0
    %559 = vmatprep.subr.bf16.mxu0 0
    %560 = vmatpush1.bf16.msra.mxu0 0
    %561 = vmatprep.subr.bf16.mxu0 0
    %562 = vmatpush1.bf16.msra.mxu0 0
    %563 = vmatprep.subr.bf16.mxu0 0
    %564 = vmatpush1.bf16.msra.mxu0 0
    %565 = vmatprep.subr.bf16.mxu0 0
    %566 = vmatpush1.bf16.msra.mxu0 0
    %567 = vmatprep.subr.bf16.mxu0 0
    %568 = vmatpush1.bf16.msra.mxu0 0
    %569 = vmatprep.subr.bf16.mxu0 0
    %570 = vmatpush1.bf16.msra.mxu0 0
    %571 = vmatprep.mubr.bf16.mxu0 0
    %572 = vmatmul.mubr.bf16.gmra.mrb[0].mxu0 %v467
    %v573 = vpop.f32.mrb[0].mxu0
    %v574 = vadd.f32 %v489, %v573
    %v575 = vpop.f32.mrb[0].mxu0
    %v576 = vpop.f32.mrb[0].mxu0
    %v577 = vpop.f32.mrb[0].mxu0
    %578 = vdwg.mxu0
    %v579 = vmax.f32 %v574, 0.0
    %v580 = vpack.c.bf16 %v579, %v579
    %v581 = vld [vmem:[#allocation10] sm:$0xf]
    %v582 = vld [vmem:[#allocation10 + $0x4] sm:$0xf]
    %v583 = vld [vmem:[#allocation10 + $0x8] sm:$0xf]
    %v584 = vld [vmem:[#allocation10 + $0xc] sm:$0xf]
    %v585 = vld [vmem:[#allocation10 + $0x10] sm:$0xf]
    %v586 = vld [vmem:[#allocation10 + $0x14] sm:$0xf]
    %v587 = vld [vmem:[#allocation10 + $0x18] sm:$0xf]
    %v588 = vld [vmem:[#allocation10 + $0x1c] sm:$0xf]
    %v589 = vld [vmem:[#allocation10 + $0x20] sm:$0xf]
    %v590 = vld [vmem:[#allocation10 + $0x24] sm:$0xf]
    %v591 = vld [vmem:[#allocation10 + $0x28] sm:$0xf]
    %v592 = vld [vmem:[#allocation10 + $0x2c] sm:$0xf]
    %v593 = vld [vmem:[#allocation10 + $0x30] sm:$0xf]
    %v594 = vld [vmem:[#allocation10 + $0x34] sm:$0xf]
    %v595 = vld [vmem:[#allocation10 + $0x38] sm:$0xf]
    %v596 = vld [vmem:[#allocation10 + $0x3c] sm:$0xf]
    %v597 = vld [vmem:[%s10] sm:$0x1]
    %v599 = vlaneseq
    %v600 = vshrl.u32 %v599, 7
    %v601 = vsub.s32 0, %v600
    %v602 = vrot.slane %v597, %v601
    %v620 = vunpack.c.l.b16 %v581
    %v621 = vunpack.c.l.b16 %v582
    %v622 = vunpack.c.l.b16 %v583
    %v623 = vunpack.c.l.b16 %v584
    %v624 = vunpack.c.l.b16 %v585
    %v625 = vunpack.c.l.b16 %v586
    %v626 = vunpack.c.l.b16 %v587
    %v627 = vunpack.c.l.b16 %v588
    %v628 = vunpack.c.l.b16 %v589
    %v629 = vunpack.c.l.b16 %v590
    %v630 = vunpack.c.l.b16 %v591
    %v631 = vunpack.c.l.b16 %v592
    %v632 = vunpack.c.l.b16 %v593
    %v633 = vunpack.c.l.b16 %v594
    %v634 = vunpack.c.l.b16 %v595
    %v635 = vunpack.c.l.b16 %v596
    %v636 = vpack.c.b16 %v621, %v620
    %v637 = vpack.c.b16 %v623, %v622
    %v638 = vpack.c.b16 %v625, %v624
    %v639 = vpack.c.b16 %v627, %v626
    %v640 = vpack.c.b16 %v629, %v628
    %v641 = vpack.c.b16 %v631, %v630
    %v642 = vpack.c.b16 %v633, %v632
    %v643 = vpack.c.b16 %v635, %v634
    %652 = vmatprep.subr.bf16.mxu0 0
    %653 = vmatpush1.bf16.msra.mxu0 %v636
    %654 = vmatprep.subr.bf16.mxu0 0
    %655 = vmatpush1.bf16.msra.mxu0 %v637
    %656 = vmatprep.subr.bf16.mxu0 0
    %657 = vmatpush1.bf16.msra.mxu0 %v638
    %658 = vmatprep.subr.bf16.mxu0 0
    %659 = vmatpush1.bf16.msra.mxu0 %v639
    %660 = vmatprep.subr.bf16.mxu0 0
    %661 = vmatpush1.bf16.msra.mxu0 %v640
    %662 = vmatprep.subr.bf16.mxu0 0
    %663 = vmatpush1.bf16.msra.mxu0 %v641
    %664 = vmatprep.subr.bf16.mxu0 0
    %665 = vmatpush1.bf16.msra.mxu0 %v642
    %666 = vmatprep.subr.bf16.mxu0 0
    %667 = vmatpush1.bf16.msra.mxu0 %v643
    %668 = vmatprep.subr.bf16.mxu0 0
    %669 = vmatpush1.bf16.msra.mxu0 0
    %670 = vmatprep.subr.bf16.mxu0 0
    %671 = vmatpush1.bf16.msra.mxu0 0
    %672 = vmatprep.subr.bf16.mxu0 0
    %673 = vmatpush1.bf16.msra.mxu0 0
    %674 = vmatprep.subr.bf16.mxu0 0
    %675 = vmatpush1.bf16.msra.mxu0 0
    %676 = vmatprep.subr.bf16.mxu0 0
    %677 = vmatpush1.bf16.msra.mxu0 0
    %678 = vmatprep.subr.bf16.mxu0 0
    %679 = vmatpush1.bf16.msra.mxu0 0
    %680 = vmatprep.subr.bf16.mxu0 0
    %681 = vmatpush1.bf16.msra.mxu0 0
    %682 = vmatprep.subr.bf16.mxu0 0
    %683 = vmatpush1.bf16.msra.mxu0 0
    %684 = vmatprep.mubr.bf16.mxu0 0
    %685 = vmatmul.mubr.bf16.gmra.mrb[0].mxu0 %v580
    %v686 = vpop.f32.mrb[0].mxu0
    %v687 = vadd.f32 %v602, %v686
    %v688 = vpop.f32.mrb[0].mxu0
    %v689 = vpop.f32.mrb[0].mxu0
    %v690 = vpop.f32.mrb[0].mxu0
    %691 = vdwg.mxu0
    %v692 = vmax.f32 %v687, 0.0
    %v693 = vpack.c.bf16 %v692, %v692
    %v694 = vld [vmem:[#allocation11] sm:$0xf]
    %v695 = vld [vmem:[#allocation11 + $0x4] sm:$0xf]
    %v696 = vld [vmem:[#allocation11 + $0x8] sm:$0xf]
    %v697 = vld [vmem:[#allocation11 + $0xc] sm:$0xf]
    %v698 = vld [vmem:[#allocation11 + $0x10] sm:$0xf]
    %v699 = vld [vmem:[#allocation11 + $0x14] sm:$0xf]
    %v700 = vld [vmem:[#allocation11 + $0x18] sm:$0xf]
    %v701 = vld [vmem:[#allocation11 + $0x1c] sm:$0xf]
    %v702 = vld [vmem:[#allocation11 + $0x20] sm:$0xf]
    %v703 = vld [vmem:[#allocation11 + $0x24] sm:$0xf]
    %v704 = vld [vmem:[#allocation11 + $0x28] sm:$0xf]
    %v705 = vld [vmem:[#allocation11 + $0x2c] sm:$0xf]
    %v706 = vld [vmem:[#allocation11 + $0x30] sm:$0xf]
    %v707 = vld [vmem:[#allocation11 + $0x34] sm:$0xf]
    %v708 = vld [vmem:[#allocation11 + $0x38] sm:$0xf]
    %v709 = vld [vmem:[#allocation11 + $0x3c] sm:$0xf]
    %v710 = vld [vmem:[%s12] sm:$0x1]
    %v712 = vlaneseq
    %v713 = vshrl.u32 %v712, 7
    %v714 = vsub.s32 0, %v713
    %v715 = vrot.slane %v710, %v714
    %v733 = vunpack.c.l.b16 %v694
    %v734 = vunpack.c.l.b16 %v695
    %v735 = vunpack.c.l.b16 %v696
    %v736 = vunpack.c.l.b16 %v697
    %v737 = vunpack.c.l.b16 %v698
    %v738 = vunpack.c.l.b16 %v699
    %v739 = vunpack.c.l.b16 %v700
    %v740 = vunpack.c.l.b16 %v701
    %v741 = vunpack.c.l.b16 %v702
    %v742 = vunpack.c.l.b16 %v703
    %v743 = vunpack.c.l.b16 %v704
    %v744 = vunpack.c.l.b16 %v705
    %v745 = vunpack.c.l.b16 %v706
    %v746 = vunpack.c.l.b16 %v707
    %v747 = vunpack.c.l.b16 %v708
    %v748 = vunpack.c.l.b16 %v709
    %v749 = vpack.c.b16 %v734, %v733
    %v750 = vpack.c.b16 %v736, %v735
    %v751 = vpack.c.b16 %v738, %v737
    %v752 = vpack.c.b16 %v740, %v739
    %v753 = vpack.c.b16 %v742, %v741
    %v754 = vpack.c.b16 %v744, %v743
    %v755 = vpack.c.b16 %v746, %v745
    %v756 = vpack.c.b16 %v748, %v747
    %765 = vmatprep.subr.bf16.mxu0 0
    %766 = vmatpush1.bf16.msra.mxu0 %v749
    %767 = vmatprep.subr.bf16.mxu0 0
    %768 = vmatpush1.bf16.msra.mxu0 %v750
    %769 = vmatprep.subr.bf16.mxu0 0
    %770 = vmatpush1.bf16.msra.mxu0 %v751
    %771 = vmatprep.subr.bf16.mxu0 0
    %772 = vmatpush1.bf16.msra.mxu0 %v752
    %773 = vmatprep.subr.bf16.mxu0 0
    %774 = vmatpush1.bf16.msra.mxu0 %v753
    %775 = vmatprep.subr.bf16.mxu0 0
    %776 = vmatpush1.bf16.msra.mxu0 %v754
    %777 = vmatprep.subr.bf16.mxu0 0
    %778 = vmatpush1.bf16.msra.mxu0 %v755
    %779 = vmatprep.subr.bf16.mxu0 0
    %780 = vmatpush1.bf16.msra.mxu0 %v756
    %781 = vmatprep.subr.bf16.mxu0 0
    %782 = vmatpush1.bf16.msra.mxu0 0
    %783 = vmatprep.subr.bf16.mxu0 0
    %784 = vmatpush1.bf16.msra.mxu0 0
    %785 = vmatprep.subr.bf16.mxu0 0
    %786 = vmatpush1.bf16.msra.mxu0 0
    %787 = vmatprep.subr.bf16.mxu0 0
    %788 = vmatpush1.bf16.msra.mxu0 0
    %789 = vmatprep.subr.bf16.mxu0 0
    %790 = vmatpush1.bf16.msra.mxu0 0
    %791 = vmatprep.subr.bf16.mxu0 0
    %792 = vmatpush1.bf16.msra.mxu0 0
    %793 = vmatprep.subr.bf16.mxu0 0
    %794 = vmatpush1.bf16.msra.mxu0 0
    %795 = vmatprep.subr.bf16.mxu0 0
    %796 = vmatpush1.bf16.msra.mxu0 0
    %797 = vmatprep.mubr.bf16.mxu0 0
    %798 = vmatmul.mubr.bf16.gmra.mrb[0].mxu0 %v693
    %v799 = vpop.f32.mrb[0].mxu0
    %v800 = vadd.f32 %v715, %v799
    %v801 = vpop.f32.mrb[0].mxu0
    %v802 = vpop.f32.mrb[0].mxu0
    %v803 = vpop.f32.mrb[0].mxu0
    %804 = vdwg.mxu0
    %805 = vst [vmem:[#allocation13] sm:$0xff] %v800
    // Predicated region
    $region78: #{complex_model_forward.1} parent=1 // pred_check
      _
    $region79: #{complex_model_forward.1} parent=1 // pred_check_branch
      %807 = sbr.rel (0) target = $region81
    $region80: #{complex_model_forward.1} parent=1 // pred_region
      %s809 = ssub.s32 128, 128
      %810 = vsyncadd [#allocation4], %s809
      %s812 = sshll.u32 [#allocation13], 4
      %s813 = int_to_ptr.vmem [resolvable:$true] %s812
      %815 = dma.vmem_to_hbm [thread:$0]  %s813, 128, %s13, [#allocation4]
    $region81: #{complex_model_forward.1} parent=1 // pred_fallthru
      _
    // Predicated region
    $region82: #{complex_model_forward.1} parent=1 // pred_check
      _
    $region83: #{complex_model_forward.1} parent=1 // pred_check_branch
      %817 = sbr.rel (0) target = $region85
    $region84: #{complex_model_forward.1} parent=1 // pred_region
      %818 = dma.done [#allocation4], 128
    $region85: #{complex_model_forward.1} parent=1 // pred_fallthru
      _
    %819 = vsyncpa [#allocation3], 1
    %820 = vsyncpa [#allocation6], 1
    %821 = vsyncpa [#allocation9], 1
    %822 = vsyncpa [#allocation12], 1
    %823 = vsyncpa [#allocation4], 1

</llo_original>
